<compile_context>
chip_gen: v7x
topology: tpu7x:2x2x1
jax: 0.10.0
libtpu: 0.0.40
codegen_flags: <defaults>
</compile_context>

<pallas_src>
import functools

import jax
import jax.numpy as jnp
from jax.experimental import pallas as pl
from jax.experimental.pallas import tpu as pltpu

BN_EPS = 1e-5


@functools.lru_cache(maxsize=1)
def _vmem_plan():
    """Return (block_budget_bytes, vmem_limit_bytes), TPU-generation aware."""
    try:
        cap = int(pltpu.get_tpu_info().vmem_capacity_bytes)
    except Exception:
        cap = 64 << 20  # conservative (v7x-sized) fallback
    blk_budget = min(cap // 3, 40 << 20)            # ~21 MiB on v7x, 40 MiB on v5e/v6e
    vmem_limit = min((cap * 3) // 4, blk_budget + (24 << 20))
    return blk_budget, vmem_limit


def _choose_tile(hw, cin, cout, blk_budget):
    """Largest lane tile whose double-buffered (x, out) f32 blocks fit the budget."""
    per_lane = 4 * 2 * (cin + cout)                 # f32, x block + out block, x2 buffers
    t_max = max(128, (blk_budget // per_lane) // 128 * 128)
    if hw <= t_max:
        return hw, 1, False                         # one full-extent tile, no masking
    n_tiles = pl.cdiv(hw, t_max)
    return t_max, n_tiles, (hw % t_max) != 0


# --------------------------------------------------------------------------- #
# Kernels
# --------------------------------------------------------------------------- #
def _stats_kernel(x_ref, gram_ref, sx_ref, *, hw, tile, masked):
    """Pass 1: input-side sufficient stats. Gram = x@x^T (MXU), sx = sum_lanes(x)."""
    x = x_ref[...]                                  # (Cin, T)
    if masked:
        rem = hw - pl.program_id(1) * tile          # valid lanes in this tile
        lane = jax.lax.broadcasted_iota(jnp.int32, x.shape, 1)
        x = jnp.where(lane < rem, x, 0.0)
    gram_ref[...] = jax.lax.dot_general(
        x, x, dimension_numbers=(((1,), (1,)), ((), ())),
        preferred_element_type=jnp.float32)         # (Cin, Cin)
    sx_ref[...] = jnp.sum(x, axis=-1, keepdims=True)  # (Cin, 1)


def _apply_kernel(x_ref, w_ref, scale_ref, shift_ref, o_ref):
    """Pass 2: y = W @ x, fused BN scale/shift + ReLU, lane-dense store."""
    y = jnp.dot(w_ref[...], x_ref[...], preferred_element_type=jnp.float32)  # (Cout, T)
    o_ref[...] = jnp.maximum(y * scale_ref[...] + shift_ref[...], 0.0).astype(o_ref.dtype)


def _fused_kernel(x_ref, w_ref, gamma_ref, beta_ref, o_ref, y_ref, *, n_batch, hw):
    """Single-launch path for small problems: everything resident in VMEM."""
    w = w_ref[...]                                  # (Cout, Cin)
    cout = w.shape[0]
    acc_s = jnp.zeros((cout, 1), jnp.float32)
    acc_q = jnp.zeros((cout, 1), jnp.float32)
    for b in range(n_batch):                        # small static unroll
        y = jnp.dot(w, x_ref[b], preferred_element_type=jnp.float32)   # (Cout, HW)
        y_ref[b] = y
        acc_s = acc_s + jnp.sum(y, axis=-1, keepdims=True)
        acc_q = acc_q + jnp.sum(y * y, axis=-1, keepdims=True)
    m = float(n_batch * hw)
    mean = acc_s / m
    var = acc_q / m - mean * mean
    inv_std = jax.lax.rsqrt(var + BN_EPS)
    scale = gamma_ref[...] * inv_std                # (Cout, 1)
    shift = beta_ref[...] - mean * scale
    for b in range(n_batch):
        o_ref[b] = jnp.maximum(y_ref[b] * scale + shift, 0.0).astype(o_ref.dtype)


# --------------------------------------------------------------------------- #
# Wrappers
# --------------------------------------------------------------------------- #
def _mlp_fused(x3, w_mat, gamma, beta, vmem_limit):
    n, cin, hw = x3.shape
    cout = w_mat.shape[0]
    kernel = functools.partial(_fused_kernel, n_batch=n, hw=hw)
    return pl.pallas_call(
        kernel,
        out_shape=jax.ShapeDtypeStruct((n, cout, hw), jnp.float32),
        grid=(1,),
        in_specs=[pl.BlockSpec((n, cin, hw), lambda i: (0, 0, 0)),
                  pl.BlockSpec((cout, cin), lambda i: (0, 0)),
                  pl.BlockSpec((cout, 1), lambda i: (0, 0)),
                  pl.BlockSpec((cout, 1), lambda i: (0, 0))],
        out_specs=pl.BlockSpec((n, cout, hw), lambda i: (0, 0, 0)),
        scratch_shapes=[pltpu.VMEM((n, cout, hw), jnp.float32)],
        compiler_params=pltpu.CompilerParams(
            dimension_semantics=("arbitrary",),
            vmem_limit_bytes=vmem_limit),
    )(x3, w_mat, gamma.reshape(cout, 1), beta.reshape(cout, 1))


def _mlp_two_pass(x3, w_mat, gamma, beta, blk_budget, vmem_limit):
    n, cin, hw = x3.shape
    cout = w_mat.shape[0]
    tile, n_tiles, masked = _choose_tile(hw, cin, cout, blk_budget)

    x_spec = pl.BlockSpec((None, cin, tile), lambda i, t: (i, 0, t))

    # ---- pass 1: input-side sufficient stats per (batch, tile); both axes parallel
    stats_kernel = functools.partial(_stats_kernel, hw=hw, tile=tile, masked=masked)
    gram_p, sx_p = pl.pallas_call(
        stats_kernel,
        out_shape=(jax.ShapeDtypeStruct((n, n_tiles, cin, cin), jnp.float32),
                   jax.ShapeDtypeStruct((n, n_tiles, cin, 1), jnp.float32)),
        grid=(n, n_tiles),
        in_specs=[x_spec],
        out_specs=(pl.BlockSpec((None, None, cin, cin), lambda i, t: (i, t, 0, 0)),
                   pl.BlockSpec((None, None, cin, 1), lambda i, t: (i, t, 0, 0))),
        compiler_params=pltpu.CompilerParams(
            dimension_semantics=("parallel", "parallel"),
            vmem_limit_bytes=vmem_limit),
    )(x3)

    # ---- tiny finalize: fold input stats through W into per-channel scale/shift
    m = float(n * hw)
    g = jnp.sum(gram_p, axis=(0, 1))                # (Cin, Cin)
    sx = jnp.sum(sx_p, axis=(0, 1))                 # (Cin, 1)
    mean_y = (w_mat @ sx) / m                       # (Cout, 1)
    ey2 = jnp.sum((w_mat @ g) * w_mat, axis=1, keepdims=True) / m   # diag(W G W^T)/m
    var_y = ey2 - mean_y * mean_y
    inv_std = jax.lax.rsqrt(var_y + BN_EPS)
    scale = gamma.reshape(cout, 1) * inv_std
    shift = beta.reshape(cout, 1) - mean_y * scale

    # ---- pass 2: recompute y per tile (Cin small), fused scale/shift + ReLU
    cs_spec = pl.BlockSpec((cout, 1), lambda i, t: (0, 0))
    out = pl.pallas_call(
        _apply_kernel,
        out_shape=jax.ShapeDtypeStruct((n, cout, hw), jnp.float32),
        grid=(n, n_tiles),
        in_specs=[x_spec,
                  pl.BlockSpec((cout, cin), lambda i, t: (0, 0)),
                  cs_spec, cs_spec],
        out_specs=pl.BlockSpec((None, cout, tile), lambda i, t: (i, 0, t)),
        compiler_params=pltpu.CompilerParams(
            dimension_semantics=("parallel", "parallel"),
            vmem_limit_bytes=vmem_limit),
    )(x3, w_mat, scale, shift)
    return out


def mlp_forward(x_nchw, w_conv, b_conv, gamma, beta, *, force_two_pass=False):
    """Conv2d(1x1) -> BatchNorm2d(train) -> ReLU.  x: (N,Cin,H,W) f32 -> (N,Cout,H,W)."""
    # Conv bias is exactly cancelled by training-mode BN's mean subtraction.
    del b_conv
    n, cin, h, w = x_nchw.shape
    cout = w_conv.shape[0]
    hw = h * w

    x3 = x_nchw.reshape(n, cin, hw)                 # free (metadata only)
    w_mat = w_conv.reshape(cout, cin)
    blk_budget, vmem_limit = _vmem_plan()

    fused_bytes = 4 * n * hw * (cin + 2 * cout)     # x + y scratch + out, f32
    if (not force_two_pass) and n <= 16 and fused_bytes <= min(blk_budget, 12 << 20):
        out3 = _mlp_fused(x3, w_mat, gamma, beta, vmem_limit)
    else:
        out3 = _mlp_two_pass(x3, w_mat, gamma, beta, blk_budget, vmem_limit)
    return out3.reshape(n, cout, h, w)


def init_params(key, in_channels, out_channels):
    """Deterministic init matching the PyTorch module's __init__."""
    k_w, k_b = jax.random.split(key)

    # nn.init.xavier_uniform_ on Conv2d weight (Cout, Cin, 1, 1)
    bound_w = (6.0 / (in_channels + out_channels)) ** 0.5
    w_conv = jax.random.uniform(
        k_w, (out_channels, in_channels, 1, 1), jnp.float32,
        minval=-bound_w, maxval=bound_w)

    # Conv2d default bias init: U(-1/sqrt(fan_in), 1/sqrt(fan_in))
    bound_b = 1.0 / (in_channels ** 0.5)
    b_conv = jax.random.uniform(
        k_b, (out_channels,), jnp.float32, minval=-bound_b, maxval=bound_b)

    # BatchNorm2d default affine init
    gamma = jnp.ones((out_channels,), jnp.float32)
    beta = jnp.zeros((out_channels,), jnp.float32)
    return w_conv, b_conv, gamma, beta


if __name__ == "__main__":
    key = jax.random.PRNGKey(0)
    k_x, k_p = jax.random.split(key)

    N, C_IN, H, W = 2, 4, 16, 16
    C_OUT = 32

    x = jax.random.normal(k_x, (N, C_IN, H, W), jnp.float32)
    w_conv, b_conv, gamma, beta = init_params(k_p, C_IN, C_OUT)

    # Pure-JAX reference of the PyTorch forward (conv bias included; BN cancels it).
    y_ref = (jnp.einsum("oc,nchw->nohw", w_conv.reshape(C_OUT, C_IN), x)
             + b_conv.reshape(1, C_OUT, 1, 1))
    mean_r = jnp.mean(y_ref, axis=(0, 2, 3), keepdims=True)
    var_r = jnp.mean((y_ref - mean_r) ** 2, axis=(0, 2, 3), keepdims=True)
    ref = jnp.maximum(
        (y_ref - mean_r) * jax.lax.rsqrt(var_r + BN_EPS)
        * gamma.reshape(1, C_OUT, 1, 1) + beta.reshape(1, C_OUT, 1, 1), 0.0)

    # Fused single-kernel path (auto-selected at this size).
    out_fused = jax.jit(mlp_forward)(x, w_conv, b_conv, gamma, beta)
    jax.block_until_ready(out_fused)

    # Two-pass tiled path (forced) to validate the large-shape code path too.
    out_2p = jax.jit(functools.partial(mlp_forward, force_two_pass=True))(
        x, w_conv, b_conv, gamma, beta)
    jax.block_until_ready(out_2p)

    for out in (out_fused, out_2p):
        assert out.shape == (N, C_OUT, H, W), out.shape
        assert out.dtype == jnp.float32
        assert jnp.allclose(out, ref, atol=2e-3, rtol=2e-3), \
            float(jnp.max(jnp.abs(out - ref)))
    print("KERNEL_OK")
</pallas_src>

<mosaic_0001>
module attributes {stable_mosaic.version = 11 : i64} {
  func.func @_fused_kernel(%arg0: i32, %arg1: memref<2x4x256xf32, #tpu.memory_space<vmem>>, %arg2: memref<32x4xf32, #tpu.memory_space<vmem>>, %arg3: memref<32x1xf32, #tpu.memory_space<vmem>>, %arg4: memref<32x1xf32, #tpu.memory_space<vmem>>, %arg5: memref<2x32x256xf32, #tpu.memory_space<vmem>>, %arg6: memref<2x32x256xf32, #tpu.memory_space<vmem>>) attributes {dimension_semantics = [#tpu.dimension_semantics<arbitrary>], iteration_bounds = array<i64: 1>, scalar_prefetch = 0 : i64, scratch_operands = 1 : i64, tpu.core_type = #tpu.core_type<tc>, window_params = [{pipeline_mode = #tpu.pipeline_mode<synchronous>, transform_indices = @transform_0, window_bounds = array<i64: 2, 4, 256>}, {pipeline_mode = #tpu.pipeline_mode<synchronous>, transform_indices = @transform_1, window_bounds = array<i64: 32, 4>}, {pipeline_mode = #tpu.pipeline_mode<synchronous>, transform_indices = @transform_2, window_bounds = array<i64: 32, 1>}, {pipeline_mode = #tpu.pipeline_mode<synchronous>, transform_indices = @transform_3, window_bounds = array<i64: 32, 1>}, {pipeline_mode = #tpu.pipeline_mode<synchronous>, transform_indices = @transform_4, window_bounds = array<i64: 2, 32, 256>}]} {
    %c0 = arith.constant 0 : index
    %c0_0 = arith.constant 0 : index
    %0 = vector.load %arg2[%c0, %c0_0] : memref<32x4xf32, #tpu.memory_space<vmem>>, vector<32x4xf32>
    %cst = arith.constant 0.000000e+00 : f32
    %1 = vector.broadcast %cst : f32 to vector<32x1xf32>
    %cst_1 = arith.constant 0.000000e+00 : f32
    %2 = vector.broadcast %cst_1 : f32 to vector<32x1xf32>
    %c0_2 = arith.constant 0 : index
    %c0_3 = arith.constant 0 : index
    %c0_4 = arith.constant 0 : index
    %3 = vector.load %arg1[%c0_2, %c0_3, %c0_4] : memref<2x4x256xf32, #tpu.memory_space<vmem>>, vector<1x4x256xf32>
    %4 = vector.shape_cast %3 : vector<1x4x256xf32> to vector<4x256xf32>
    %cst_5 = arith.constant dense<0.000000e+00> : vector<32x256xf32>
    %5 = tpu.matmul %0, %4, %cst_5 {dimension_numbers = #tpu.dot_dimension_numbers<[1], [0], [0], [1], [0, 0, 1, 1], [], []>} : vector<32x4xf32>, vector<4x256xf32>, vector<32x256xf32> -> vector<32x256xf32>
    %c0_6 = arith.constant 0 : index
    %c0_7 = arith.constant 0 : index
    %c0_8 = arith.constant 0 : index
    %6 = vector.load %arg6[%c0_6, %c0_7, %c0_8] : memref<2x32x256xf32, #tpu.memory_space<vmem>>, vector<1x32x256xf32>
    %7 = vector.shape_cast %6 : vector<1x32x256xf32> to vector<32x256xf32>
    %8 = vector.shape_cast %5 : vector<32x256xf32> to vector<1x32x256xf32>
    tpu.vector_store %arg6[%c0_6, %c0_7, %c0_8], %8 {strides = array<i32>} : memref<2x32x256xf32, #tpu.memory_space<vmem>>, vector<1x32x256xf32>,
    %cst_9 = arith.constant dense<0.000000e+00> : vector<32xf32>
    %9 = vector.multi_reduction <add>, %5, %cst_9 [1] : vector<32x256xf32> to vector<32xf32>
    %10 = vector.shape_cast %9 : vector<32xf32> to vector<32x1xf32>
    %11 = arith.addf %1, %10 : vector<32x1xf32>
    %12 = arith.mulf %5, %5 : vector<32x256xf32>
    %cst_10 = arith.constant dense<0.000000e+00> : vector<32xf32>
    %13 = vector.multi_reduction <add>, %12, %cst_10 [1] : vector<32x256xf32> to vector<32xf32>
    %14 = vector.shape_cast %13 : vector<32xf32> to vector<32x1xf32>
    %15 = arith.addf %2, %14 : vector<32x1xf32>
    %c1 = arith.constant 1 : index
    %c0_11 = arith.constant 0 : index
    %c0_12 = arith.constant 0 : index
    %16 = vector.load %arg1[%c1, %c0_11, %c0_12] : memref<2x4x256xf32, #tpu.memory_space<vmem>>, vector<1x4x256xf32>
    %17 = vector.shape_cast %16 : vector<1x4x256xf32> to vector<4x256xf32>
    %cst_13 = arith.constant dense<0.000000e+00> : vector<32x256xf32>
    %18 = tpu.matmul %0, %17, %cst_13 {dimension_numbers = #tpu.dot_dimension_numbers<[1], [0], [0], [1], [0, 0, 1, 1], [], []>} : vector<32x4xf32>, vector<4x256xf32>, vector<32x256xf32> -> vector<32x256xf32>
    %c1_14 = arith.constant 1 : index
    %c0_15 = arith.constant 0 : index
    %c0_16 = arith.constant 0 : index
    %19 = vector.load %arg6[%c1_14, %c0_15, %c0_16] : memref<2x32x256xf32, #tpu.memory_space<vmem>>, vector<1x32x256xf32>
    %20 = vector.shape_cast %19 : vector<1x32x256xf32> to vector<32x256xf32>
    %21 = vector.shape_cast %18 : vector<32x256xf32> to vector<1x32x256xf32>
    tpu.vector_store %arg6[%c1_14, %c0_15, %c0_16], %21 {strides = array<i32>} : memref<2x32x256xf32, #tpu.memory_space<vmem>>, vector<1x32x256xf32>,
    %cst_17 = arith.constant dense<0.000000e+00> : vector<32xf32>
    %22 = vector.multi_reduction <add>, %18, %cst_17 [1] : vector<32x256xf32> to vector<32xf32>
    %23 = vector.shape_cast %22 : vector<32xf32> to vector<32x1xf32>
    %24 = arith.addf %11, %23 : vector<32x1xf32>
    %25 = arith.mulf %18, %18 : vector<32x256xf32>
    %cst_18 = arith.constant dense<0.000000e+00> : vector<32xf32>
    %26 = vector.multi_reduction <add>, %25, %cst_18 [1] : vector<32x256xf32> to vector<32xf32>
    %27 = vector.shape_cast %26 : vector<32xf32> to vector<32x1xf32>
    %28 = arith.addf %15, %27 : vector<32x1xf32>
    %cst_19 = arith.constant 5.120000e+02 : f32
    %29 = vector.broadcast %cst_19 : f32 to vector<32x1xf32>
    %30 = arith.divf %24, %29 : vector<32x1xf32>
    %cst_20 = arith.constant 5.120000e+02 : f32
    %31 = vector.broadcast %cst_20 : f32 to vector<32x1xf32>
    %32 = arith.divf %28, %31 : vector<32x1xf32>
    %33 = arith.mulf %30, %30 : vector<32x1xf32>
    %34 = arith.subf %32, %33 : vector<32x1xf32>
    %cst_21 = arith.constant 9.99999974E-6 : f32
    %35 = vector.broadcast %cst_21 : f32 to vector<32x1xf32>
    %36 = arith.addf %34, %35 : vector<32x1xf32>
    %37 = math.rsqrt %36 : vector<32x1xf32>
    %c0_22 = arith.constant 0 : index
    %c0_23 = arith.constant 0 : index
    %38 = vector.load %arg3[%c0_22, %c0_23] : memref<32x1xf32, #tpu.memory_space<vmem>>, vector<32x1xf32>
    %39 = arith.mulf %38, %37 : vector<32x1xf32>
    %c0_24 = arith.constant 0 : index
    %c0_25 = arith.constant 0 : index
    %40 = vector.load %arg4[%c0_24, %c0_25] : memref<32x1xf32, #tpu.memory_space<vmem>>, vector<32x1xf32>
    %41 = arith.mulf %30, %39 : vector<32x1xf32>
    %42 = arith.subf %40, %41 : vector<32x1xf32>
    %c0_26 = arith.constant 0 : index
    %c0_27 = arith.constant 0 : index
    %c0_28 = arith.constant 0 : index
    %43 = vector.load %arg6[%c0_26, %c0_27, %c0_28] : memref<2x32x256xf32, #tpu.memory_space<vmem>>, vector<1x32x256xf32>
    %44 = vector.shape_cast %43 : vector<1x32x256xf32> to vector<32x256xf32>
    %45 = vector.broadcast %39 : vector<32x1xf32> to vector<32x256xf32>
    %46 = arith.mulf %44, %45 : vector<32x256xf32>
    %47 = vector.broadcast %42 : vector<32x1xf32> to vector<32x256xf32>
    %48 = arith.addf %46, %47 : vector<32x256xf32>
    %cst_29 = arith.constant 0.000000e+00 : f32
    %49 = vector.broadcast %cst_29 : f32 to vector<32x256xf32>
    %50 = arith.maximumf %48, %49 : vector<32x256xf32>
    %c0_30 = arith.constant 0 : index
    %c0_31 = arith.constant 0 : index
    %c0_32 = arith.constant 0 : index
    %51 = vector.load %arg5[%c0_30, %c0_31, %c0_32] : memref<2x32x256xf32, #tpu.memory_space<vmem>>, vector<1x32x256xf32>
    %52 = vector.shape_cast %51 : vector<1x32x256xf32> to vector<32x256xf32>
    %53 = vector.shape_cast %50 : vector<32x256xf32> to vector<1x32x256xf32>
    tpu.vector_store %arg5[%c0_30, %c0_31, %c0_32], %53 {strides = array<i32>} : memref<2x32x256xf32, #tpu.memory_space<vmem>>, vector<1x32x256xf32>,
    %c1_33 = arith.constant 1 : index
    %c0_34 = arith.constant 0 : index
    %c0_35 = arith.constant 0 : index
    %54 = vector.load %arg6[%c1_33, %c0_34, %c0_35] : memref<2x32x256xf32, #tpu.memory_space<vmem>>, vector<1x32x256xf32>
    %55 = vector.shape_cast %54 : vector<1x32x256xf32> to vector<32x256xf32>
    %56 = vector.broadcast %39 : vector<32x1xf32> to vector<32x256xf32>
    %57 = arith.mulf %55, %56 : vector<32x256xf32>
    %58 = vector.broadcast %42 : vector<32x1xf32> to vector<32x256xf32>
    %59 = arith.addf %57, %58 : vector<32x256xf32>
    %cst_36 = arith.constant 0.000000e+00 : f32
    %60 = vector.broadcast %cst_36 : f32 to vector<32x256xf32>
    %61 = arith.maximumf %59, %60 : vector<32x256xf32>
    %c1_37 = arith.constant 1 : index
    %c0_38 = arith.constant 0 : index
    %c0_39 = arith.constant 0 : index
    %62 = vector.load %arg5[%c1_37, %c0_38, %c0_39] : memref<2x32x256xf32, #tpu.memory_space<vmem>>, vector<1x32x256xf32>
    %63 = vector.shape_cast %62 : vector<1x32x256xf32> to vector<32x256xf32>
    %64 = vector.shape_cast %61 : vector<32x256xf32> to vector<1x32x256xf32>
    tpu.vector_store %arg5[%c1_37, %c0_38, %c0_39], %64 {strides = array<i32>} : memref<2x32x256xf32, #tpu.memory_space<vmem>>, vector<1x32x256xf32>,
    return
  }
  func.func @transform_0(%arg0: i32) -> (i32, i32, i32) {
    %c0_i32 = arith.constant 0 : i32
    %c0_i32_0 = arith.constant 0 : i32
    %c0_i32_1 = arith.constant 0 : i32
    %c0_i32_2 = arith.constant 0 : i32
    return %c0_i32, %c0_i32_0, %c0_i32_1 : i32, i32, i32
  }
  func.func @transform_1(%arg0: i32) -> (i32, i32) {
    %c0_i32 = arith.constant 0 : i32
    %c0_i32_0 = arith.constant 0 : i32
    %c0_i32_1 = arith.constant 0 : i32
    return %c0_i32, %c0_i32_0 : i32, i32
  }
  func.func @transform_2(%arg0: i32) -> (i32, i32) {
    %c0_i32 = arith.constant 0 : i32
    %c0_i32_0 = arith.constant 0 : i32
    %c0_i32_1 = arith.constant 0 : i32
    return %c0_i32, %c0_i32_0 : i32, i32
  }
  func.func @transform_3(%arg0: i32) -> (i32, i32) {
    %c0_i32 = arith.constant 0 : i32
    %c0_i32_0 = arith.constant 0 : i32
    %c0_i32_1 = arith.constant 0 : i32
    return %c0_i32, %c0_i32_0 : i32, i32
  }
  func.func @transform_4(%arg0: i32) -> (i32, i32, i32) {
    %c0_i32 = arith.constant 0 : i32
    %c0_i32_0 = arith.constant 0 : i32
    %c0_i32_1 = arith.constant 0 : i32
    %c0_i32_2 = arith.constant 0 : i32
    return %c0_i32, %c0_i32_0, %c0_i32_1 : i32, i32, i32
  }
}

</mosaic_0001>

<llo_original>
// kernel: mlp_forward.1
$region0: #{mlp_forward.1}
  #allocation0 [shape = 'u32[]', space=smem, size = 0x4, offset = 0x4, fixed_abs, tag = 'smem constant byte address 0x4 - core index']
  #allocation1 [shape = 'u32[144,128]{1,0:T(1,128)}', space=vmem, size = 0x12000, scoped, tag = 'internal scratch']
  #allocation2 [shape = 'f32[2,32,256]{2,1,0:T(8,128)}', space=vmem, size = 0x10000, scoped, tag = 'scratch operand']
  %s0 = inlined_call_operand.vmem [shape: f32[2,4,256], index: 0, kind: input, shape index: {}]
  %s1 = inlined_call_operand.vmem [shape: f32[32,4], index: 1, kind: input, shape index: {}]
  %s2 = inlined_call_operand.vmem [shape: f32[32,1], index: 2, kind: input, shape index: {}]
  %s3 = inlined_call_operand.vmem [shape: f32[32,1], index: 3, kind: input, shape index: {}]
  %s4 = inlined_call_operand.vmem [shape: f32[2,32,256], index: 4, kind: output, shape index: {}]
  %s5 = sld [smem:[#allocation0]]
  $region26: #{mlp_forward.1} parent=0
    _
  %s7 = ssub.s32 1, %s5
  %s8 = scalar_select 0, %s7, %s5
  // Predicated region
  $region2: #{mlp_forward.1} parent=0 // pred_check
    _
  $region3: #{mlp_forward.1} parent=0 // pred_check_branch
    %10 = sbr.rel (0) target = $region5
  $region4: #{mlp_forward.1} parent=0 // pred_region
    _
  $region5: #{mlp_forward.1} parent=0 // pred_fallthru
    _
  // Predicated region
  $region6: #{mlp_forward.1} parent=0 // pred_check
    _
  $region7: #{mlp_forward.1} parent=0 // pred_check_branch
    %12 = sbr.rel (0) target = $region9
  $region8: #{mlp_forward.1} parent=0 // pred_region
    _
  $region9: #{mlp_forward.1} parent=0 // pred_fallthru
    _
  // Predicated region
  $region10: #{mlp_forward.1} parent=0 // pred_check
    _
  $region11: #{mlp_forward.1} parent=0 // pred_check_branch
    %14 = sbr.rel (0) target = $region13
  $region12: #{mlp_forward.1} parent=0 // pred_region
    _
  $region13: #{mlp_forward.1} parent=0 // pred_fallthru
    _
  // Predicated region
  $region14: #{mlp_forward.1} parent=0 // pred_check
    _
  $region15: #{mlp_forward.1} parent=0 // pred_check_branch
    %16 = sbr.rel (0) target = $region17
  $region16: #{mlp_forward.1} parent=0 // pred_region
    _
  $region17: #{mlp_forward.1} parent=0 // pred_fallthru
    _
  %v17 = vld [vmem:[%s1] sm:$0xff]
  %v18 = vld [vmem:[%s1 + $0x8] sm:$0xff]
  %v19 = vld [vmem:[%s1 + $0x10] sm:$0xff]
  %v20 = vld [vmem:[%s1 + $0x18] sm:$0xff]
  %v21 = vld [vmem:[%s0] sm:$0xff]
  %v23 = vcombine.high %v21, %v21
  %vm24 = vcmask 31744
  %v26 = vsel %vm24, %v17, 0
  %v29 = vsel %vm24, %v18, 0
  %v32 = vsel %vm24, %v19, 0
  %v35 = vsel %vm24, %v20, 0
  %vm37 = vcmask 1043456
  %v38 = vsel %vm37, %v21, 0
  %v40 = vsel %vm37, %v23, 0
  %42 = vmatprep.subr.mxu0 %v40
  %43 = vmatpush1.msra.mxu0 %v38
  %44 = vmatprep.subr.mxu0 0.0
  %45 = vmatpush1.msra.mxu0 0.0
  %46 = vmatprep.subr.mxu0 0.0
  %47 = vmatpush1.msra.mxu0 0.0
  %48 = vmatprep.subr.mxu0 0.0
  %49 = vmatpush1.msra.mxu0 0.0
  %50 = vmatprep.subr.mxu0 0.0
  %51 = vmatpush1.msra.mxu0 0.0
  %52 = vmatprep.subr.mxu0 0.0
  %53 = vmatpush1.msra.mxu0 0.0
  %54 = vmatprep.subr.mxu0 0.0
  %55 = vmatpush1.msra.mxu0 0.0
  %56 = vmatprep.subr.mxu0 0.0
  %57 = vmatpush1.msra.mxu0 0.0
  %58 = vmatprep.subr.mxu0 0.0
  %59 = vmatpush1.msra.mxu0 0.0
  %60 = vmatprep.subr.mxu0 0.0
  %61 = vmatpush1.msra.mxu0 0.0
  %62 = vmatprep.subr.mxu0 0.0
  %63 = vmatpush1.msra.mxu0 0.0
  %64 = vmatprep.subr.mxu0 0.0
  %65 = vmatpush1.msra.mxu0 0.0
  %66 = vmatprep.subr.mxu0 0.0
  %67 = vmatpush1.msra.mxu0 0.0
  %68 = vmatprep.subr.mxu0 0.0
  %69 = vmatpush1.msra.mxu0 0.0
  %70 = vmatprep.subr.mxu0 0.0
  %71 = vmatpush1.msra.mxu0 0.0
  %72 = vmatprep.subr.mxu0 0.0
  %73 = vmatpush1.msra.mxu0 0.0
  %74 = vmatprep.subr.mxu0 0.0
  %75 = vmatpush1.msra.mxu0 0.0
  %76 = vmatprep.subr.mxu0 0.0
  %77 = vmatpush1.msra.mxu0 0.0
  %78 = vmatprep.subr.mxu0 0.0
  %79 = vmatpush1.msra.mxu0 0.0
  %80 = vmatprep.subr.mxu0 0.0
  %81 = vmatpush1.msra.mxu0 0.0
  %82 = vmatprep.subr.mxu0 0.0
  %83 = vmatpush1.msra.mxu0 0.0
  %84 = vmatprep.subr.mxu0 0.0
  %85 = vmatpush1.msra.mxu0 0.0
  %86 = vmatprep.subr.mxu0 0.0
  %87 = vmatpush1.msra.mxu0 0.0
  %88 = vmatprep.subr.mxu0 0.0
  %89 = vmatpush1.msra.mxu0 0.0
  %90 = vmatprep.subr.mxu0 0.0
  %91 = vmatpush1.msra.mxu0 0.0
  %92 = vmatprep.subr.mxu0 0.0
  %93 = vmatpush1.msra.mxu0 0.0
  %94 = vmatprep.subr.mxu0 0.0
  %95 = vmatpush1.msra.mxu0 0.0
  %96 = vmatprep.subr.mxu0 0.0
  %97 = vmatpush1.msra.mxu0 0.0
  %98 = vmatprep.subr.mxu0 0.0
  %99 = vmatpush1.msra.mxu0 0.0
  %100 = vmatprep.subr.mxu0 0.0
  %101 = vmatpush1.msra.mxu0 0.0
  %102 = vmatprep.subr.mxu0 0.0
  %103 = vmatpush1.msra.mxu0 0.0
  %104 = vmatprep.subr.mxu0 0.0
  %105 = vmatpush1.msra.mxu0 0.0
  %106 = vmatprep.mubr.f32.mxu0 0.0
  %107 = vmatmul.mubr.f32.gmra.mrb[0].mxu0 %v26
  %v108 = vpop.f32.mrb[0].mxu0
  %v109 = vadd.f32 0.0, %v108
  %v110 = vpop.f32.mrb[0].mxu0
  %v111 = vadd.f32 0.0, %v110
  %112 = vmatprep.mubr.f32.mxu0 0.0
  %113 = vmatmul.mubr.f32.gmra.mrb[0].mxu0 %v29
  %v114 = vpop.f32.mrb[0].mxu0
  %v115 = vadd.f32 0.0, %v114
  %v116 = vpop.f32.mrb[0].mxu0
  %v117 = vadd.f32 0.0, %v116
  %118 = vmatprep.mubr.f32.mxu0 0.0
  %119 = vmatmul.mubr.f32.gmra.mrb[0].mxu0 %v32
  %v120 = vpop.f32.mrb[0].mxu0
  %v121 = vadd.f32 0.0, %v120
  %v122 = vpop.f32.mrb[0].mxu0
  %v123 = vadd.f32 0.0, %v122
  %124 = vmatprep.mubr.f32.mxu0 0.0
  %125 = vmatmul.mubr.f32.gmra.mrb[0].mxu0 %v35
  %v126 = vpop.f32.mrb[0].mxu0
  %v127 = vadd.f32 0.0, %v126
  %v128 = vpop.f32.mrb[0].mxu0
  %v129 = vadd.f32 0.0, %v128
  %130 = vdwg.mxu0
  %131 = vst [vmem:[#allocation2] sm:$0xff] %v109
  %132 = vst [vmem:[#allocation2 + $0x8] sm:$0xff] %v111
  %133 = vst [vmem:[#allocation2 + $0x10] sm:$0xff] %v115
  %134 = vst [vmem:[#allocation2 + $0x18] sm:$0xff] %v117
  %135 = vst [vmem:[#allocation2 + $0x20] sm:$0xff] %v121
  %136 = vst [vmem:[#allocation2 + $0x28] sm:$0xff] %v123
  %137 = vst [vmem:[#allocation2 + $0x30] sm:$0xff] %v127
  %138 = vst [vmem:[#allocation2 + $0x38] sm:$0xff] %v129
  %v139 = vadd.f32 %v109, %v111
  %140 = vadd.xlane.f32.xlu0 %v139
  %v141 = vpop.xlane.xlu0 %140
  %v142 = vadd.f32 %v115, %v117
  %143 = vadd.xlane.f32.xlu0 %v142
  %v144 = vpop.xlane.xlu0 %143
  %v145 = vadd.f32 %v121, %v123
  %146 = vadd.xlane.f32.xlu0 %v145
  %v147 = vpop.xlane.xlu0 %146
  %v148 = vadd.f32 %v127, %v129
  %149 = vadd.xlane.f32.xlu0 %v148
  %v150 = vpop.xlane.xlu0 %149
  %v151 = vadd.f32 %v141, 0.0
  %v152 = vadd.f32 %v144, 0.0
  %v153 = vadd.f32 %v147, 0.0
  %v154 = vadd.f32 %v150, 0.0
  %v155 = vmul.f32 %v109, %v109
  %v156 = vmul.f32 %v111, %v111
  %v157 = vmul.f32 %v115, %v115
  %v158 = vmul.f32 %v117, %v117
  %v159 = vmul.f32 %v121, %v121
  %v160 = vmul.f32 %v123, %v123
  %v161 = vmul.f32 %v127, %v127
  %v162 = vmul.f32 %v129, %v129
  %v163 = vadd.f32 %v155, %v156
  %164 = vadd.xlane.f32.xlu0 %v163
  %v165 = vpop.xlane.xlu0 %164
  %v166 = vadd.f32 %v157, %v158
  %167 = vadd.xlane.f32.xlu0 %v166
  %v168 = vpop.xlane.xlu0 %167
  %v169 = vadd.f32 %v159, %v160
  %170 = vadd.xlane.f32.xlu0 %v169
  %v171 = vpop.xlane.xlu0 %170
  %v172 = vadd.f32 %v161, %v162
  %173 = vadd.xlane.f32.xlu0 %v172
  %v174 = vpop.xlane.xlu0 %173
  %v175 = vadd.f32 %v165, 0.0
  %v176 = vadd.f32 %v168, 0.0
  %v177 = vadd.f32 %v171, 0.0
  %v178 = vadd.f32 %v174, 0.0
  %s179 = scalar_lea.vmem %s0, 8
  %v180 = vld [vmem:[%s179] sm:$0xff]
  %v182 = vcombine.high %v180, %v180
  %v183 = vsel %vm37, %v180, 0
  %v185 = vsel %vm37, %v182, 0
  %187 = vmatprep.subr.mxu0 %v185
  %188 = vmatpush1.msra.mxu0 %v183
  %189 = vmatprep.subr.mxu0 0.0
  %190 = vmatpush1.msra.mxu0 0.0
  %191 = vmatprep.subr.mxu0 0.0
  %192 = vmatpush1.msra.mxu0 0.0
  %193 = vmatprep.subr.mxu0 0.0
  %194 = vmatpush1.msra.mxu0 0.0
  %195 = vmatprep.subr.mxu0 0.0
  %196 = vmatpush1.msra.mxu0 0.0
  %197 = vmatprep.subr.mxu0 0.0
  %198 = vmatpush1.msra.mxu0 0.0
  %199 = vmatprep.subr.mxu0 0.0
  %200 = vmatpush1.msra.mxu0 0.0
  %201 = vmatprep.subr.mxu0 0.0
  %202 = vmatpush1.msra.mxu0 0.0
  %203 = vmatprep.subr.mxu0 0.0
  %204 = vmatpush1.msra.mxu0 0.0
  %205 = vmatprep.subr.mxu0 0.0
  %206 = vmatpush1.msra.mxu0 0.0
  %207 = vmatprep.subr.mxu0 0.0
  %208 = vmatpush1.msra.mxu0 0.0
  %209 = vmatprep.subr.mxu0 0.0
  %210 = vmatpush1.msra.mxu0 0.0
  %211 = vmatprep.subr.mxu0 0.0
  %212 = vmatpush1.msra.mxu0 0.0
  %213 = vmatprep.subr.mxu0 0.0
  %214 = vmatpush1.msra.mxu0 0.0
  %215 = vmatprep.subr.mxu0 0.0
  %216 = vmatpush1.msra.mxu0 0.0
  %217 = vmatprep.subr.mxu0 0.0
  %218 = vmatpush1.msra.mxu0 0.0
  %219 = vmatprep.subr.mxu0 0.0
  %220 = vmatpush1.msra.mxu0 0.0
  %221 = vmatprep.subr.mxu0 0.0
  %222 = vmatpush1.msra.mxu0 0.0
  %223 = vmatprep.subr.mxu0 0.0
  %224 = vmatpush1.msra.mxu0 0.0
  %225 = vmatprep.subr.mxu0 0.0
  %226 = vmatpush1.msra.mxu0 0.0
  %227 = vmatprep.subr.mxu0 0.0
  %228 = vmatpush1.msra.mxu0 0.0
  %229 = vmatprep.subr.mxu0 0.0
  %230 = vmatpush1.msra.mxu0 0.0
  %231 = vmatprep.subr.mxu0 0.0
  %232 = vmatpush1.msra.mxu0 0.0
  %233 = vmatprep.subr.mxu0 0.0
  %234 = vmatpush1.msra.mxu0 0.0
  %235 = vmatprep.subr.mxu0 0.0
  %236 = vmatpush1.msra.mxu0 0.0
  %237 = vmatprep.subr.mxu0 0.0
  %238 = vmatpush1.msra.mxu0 0.0
  %239 = vmatprep.subr.mxu0 0.0
  %240 = vmatpush1.msra.mxu0 0.0
  %241 = vmatprep.subr.mxu0 0.0
  %242 = vmatpush1.msra.mxu0 0.0
  %243 = vmatprep.subr.mxu0 0.0
  %244 = vmatpush1.msra.mxu0 0.0
  %245 = vmatprep.subr.mxu0 0.0
  %246 = vmatpush1.msra.mxu0 0.0
  %247 = vmatprep.subr.mxu0 0.0
  %248 = vmatpush1.msra.mxu0 0.0
  %249 = vmatprep.subr.mxu0 0.0
  %250 = vmatpush1.msra.mxu0 0.0
  %251 = vmatprep.mubr.f32.mxu0 0.0
  %252 = vmatmul.mubr.f32.gmra.mrb[0].mxu0 %v26
  %v253 = vpop.f32.mrb[0].mxu0
  %v254 = vadd.f32 0.0, %v253
  %v255 = vpop.f32.mrb[0].mxu0
  %v256 = vadd.f32 0.0, %v255
  %257 = vmatprep.mubr.f32.mxu0 0.0
  %258 = vmatmul.mubr.f32.gmra.mrb[0].mxu0 %v29
  %v259 = vpop.f32.mrb[0].mxu0
  %v260 = vadd.f32 0.0, %v259
  %v261 = vpop.f32.mrb[0].mxu0
  %v262 = vadd.f32 0.0, %v261
  %263 = vmatprep.mubr.f32.mxu0 0.0
  %264 = vmatmul.mubr.f32.gmra.mrb[0].mxu0 %v32
  %v265 = vpop.f32.mrb[0].mxu0
  %v266 = vadd.f32 0.0, %v265
  %v267 = vpop.f32.mrb[0].mxu0
  %v268 = vadd.f32 0.0, %v267
  %269 = vmatprep.mubr.f32.mxu0 0.0
  %270 = vmatmul.mubr.f32.gmra.mrb[0].mxu0 %v35
  %v271 = vpop.f32.mrb[0].mxu0
  %v272 = vadd.f32 0.0, %v271
  %v273 = vpop.f32.mrb[0].mxu0
  %v274 = vadd.f32 0.0, %v273
  %275 = vdwg.mxu0
  %s276 = scalar_lea.vmem [#allocation2], 64
  %277 = vst [vmem:[%s276] sm:$0xff] %v254
  %278 = vst [vmem:[%s276 + $0x8] sm:$0xff] %v256
  %279 = vst [vmem:[%s276 + $0x10] sm:$0xff] %v260
  %280 = vst [vmem:[%s276 + $0x18] sm:$0xff] %v262
  %281 = vst [vmem:[%s276 + $0x20] sm:$0xff] %v266
  %282 = vst [vmem:[%s276 + $0x28] sm:$0xff] %v268
  %283 = vst [vmem:[%s276 + $0x30] sm:$0xff] %v272
  %284 = vst [vmem:[%s276 + $0x38] sm:$0xff] %v274
  %v285 = vadd.f32 %v254, %v256
  %286 = vadd.xlane.f32.xlu0 %v285
  %v287 = vpop.xlane.xlu0 %286
  %v288 = vadd.f32 %v260, %v262
  %289 = vadd.xlane.f32.xlu0 %v288
  %v290 = vpop.xlane.xlu0 %289
  %v291 = vadd.f32 %v266, %v268
  %292 = vadd.xlane.f32.xlu0 %v291
  %v293 = vpop.xlane.xlu0 %292
  %v294 = vadd.f32 %v272, %v274
  %295 = vadd.xlane.f32.xlu0 %v294
  %v296 = vpop.xlane.xlu0 %295
  %v297 = vadd.f32 %v151, %v287
  %v298 = vadd.f32 %v152, %v290
  %v299 = vadd.f32 %v153, %v293
  %v300 = vadd.f32 %v154, %v296
  %v301 = vmul.f32 %v254, %v254
  %v302 = vmul.f32 %v256, %v256
  %v303 = vmul.f32 %v260, %v260
  %v304 = vmul.f32 %v262, %v262
  %v305 = vmul.f32 %v266, %v266
  %v306 = vmul.f32 %v268, %v268
  %v307 = vmul.f32 %v272, %v272
  %v308 = vmul.f32 %v274, %v274
  %v309 = vadd.f32 %v301, %v302
  %310 = vadd.xlane.f32.xlu0 %v309
  %v311 = vpop.xlane.xlu0 %310
  %v312 = vadd.f32 %v303, %v304
  %313 = vadd.xlane.f32.xlu0 %v312
  %v314 = vpop.xlane.xlu0 %313
  %v315 = vadd.f32 %v305, %v306
  %316 = vadd.xlane.f32.xlu0 %v315
  %v317 = vpop.xlane.xlu0 %316
  %v318 = vadd.f32 %v307, %v308
  %319 = vadd.xlane.f32.xlu0 %v318
  %v320 = vpop.xlane.xlu0 %319
  %v321 = vadd.f32 %v175, %v311
  %v322 = vadd.f32 %v176, %v314
  %v323 = vadd.f32 %v177, %v317
  %v324 = vadd.f32 %v178, %v320
  %v325 = vrcp.pop 512.0
  %v326 = vmul.f32 %v297, %v325
  %v327 = vmul.f32 %v298, %v325
  %v328 = vmul.f32 %v299, %v325
  %v329 = vmul.f32 %v300, %v325
  %v330 = vmul.f32 %v321, %v325
  %v331 = vmul.f32 %v322, %v325
  %v332 = vmul.f32 %v323, %v325
  %v333 = vmul.f32 %v324, %v325
  %v334 = vmul.f32 %v326, %v326
  %v335 = vmul.f32 %v327, %v327
  %v336 = vmul.f32 %v328, %v328
  %v337 = vmul.f32 %v329, %v329
  %v338 = vsub.f32 %v330, %v334
  %v339 = vsub.f32 %v331, %v335
  %v340 = vsub.f32 %v332, %v336
  %v341 = vsub.f32 %v333, %v337
  %v342 = vadd.f32 %v338, 1e-05
  %v343 = vadd.f32 %v339, 1e-05
  %v344 = vadd.f32 %v340, 1e-05
  %v345 = vadd.f32 %v341, 1e-05
  %v346 = vrsqrt.pop %v342
  %v347 = vrsqrt.pop %v343
  %v348 = vrsqrt.pop %v344
  %v349 = vrsqrt.pop %v345
  %v350 = vld [vmem:[%s2] sm:$0xff]
  %v351 = vld [vmem:[%s2 + $0x8] sm:$0xff]
  %v352 = vld [vmem:[%s2 + $0x10] sm:$0xff]
  %v353 = vld [vmem:[%s2 + $0x18] sm:$0xff]
  %v354 = vmul.f32 %v350, %v346
  %v355 = vmul.f32 %v351, %v347
  %v356 = vmul.f32 %v352, %v348
  %v357 = vmul.f32 %v353, %v349
  %v358 = vld [vmem:[%s3] sm:$0xff]
  %v359 = vld [vmem:[%s3 + $0x8] sm:$0xff]
  %v360 = vld [vmem:[%s3 + $0x10] sm:$0xff]
  %v361 = vld [vmem:[%s3 + $0x18] sm:$0xff]
  %v362 = vmul.f32 %v326, %v354
  %v363 = vmul.f32 %v327, %v355
  %v364 = vmul.f32 %v328, %v356
  %v365 = vmul.f32 %v329, %v357
  %v366 = vsub.f32 %v358, %v362
  %v367 = vsub.f32 %v359, %v363
  %v368 = vsub.f32 %v360, %v364
  %v369 = vsub.f32 %v361, %v365
  %v370 = vld [vmem:[#allocation2] sm:$0xff]
  %v371 = vld [vmem:[#allocation2 + $0x8] sm:$0xff]
  %v372 = vld [vmem:[#allocation2 + $0x10] sm:$0xff]
  %v373 = vld [vmem:[#allocation2 + $0x18] sm:$0xff]
  %v374 = vld [vmem:[#allocation2 + $0x20] sm:$0xff]
  %v375 = vld [vmem:[#allocation2 + $0x28] sm:$0xff]
  %v376 = vld [vmem:[#allocation2 + $0x30] sm:$0xff]
  %v377 = vld [vmem:[#allocation2 + $0x38] sm:$0xff]
  %379 = vset.pattern.permute.xlu0 0
  %380 = vperm.xlu0 %379, %v354
  %v381 = vpop.permute.xlu0 %380
  %384 = vset.pattern.permute.xlu0 0
  %385 = vperm.xlu0 %384, %v355
  %v386 = vpop.permute.xlu0 %385
  %389 = vset.pattern.permute.xlu0 0
  %390 = vperm.xlu0 %389, %v356
  %v391 = vpop.permute.xlu0 %390
  %394 = vset.pattern.permute.xlu0 0
  %395 = vperm.xlu0 %394, %v357
  %v396 = vpop.permute.xlu0 %395
  %v398 = vmul.f32 %v370, %v381
  %v399 = vmul.f32 %v371, %v381
  %v400 = vmul.f32 %v372, %v386
  %v401 = vmul.f32 %v373, %v386
  %v402 = vmul.f32 %v374, %v391
  %v403 = vmul.f32 %v375, %v391
  %v404 = vmul.f32 %v376, %v396
  %v405 = vmul.f32 %v377, %v396
  %407 = vset.pattern.permute.xlu0 0
  %408 = vperm.xlu0 %407, %v366
  %v409 = vpop.permute.xlu0 %408
  %412 = vset.pattern.permute.xlu0 0
  %413 = vperm.xlu0 %412, %v367
  %v414 = vpop.permute.xlu0 %413
  %417 = vset.pattern.permute.xlu0 0
  %418 = vperm.xlu0 %417, %v368
  %v419 = vpop.permute.xlu0 %418
  %422 = vset.pattern.permute.xlu0 0
  %423 = vperm.xlu0 %422, %v369
  %v424 = vpop.permute.xlu0 %423
  %v426 = vadd.f32 %v398, %v409
  %v427 = vadd.f32 %v399, %v409
  %v428 = vadd.f32 %v400, %v414
  %v429 = vadd.f32 %v401, %v414
  %v430 = vadd.f32 %v402, %v419
  %v431 = vadd.f32 %v403, %v419
  %v432 = vadd.f32 %v404, %v424
  %v433 = vadd.f32 %v405, %v424
  %v434 = vmax.f32 %v426, 0.0
  %v435 = vmax.f32 %v427, 0.0
  %v436 = vmax.f32 %v428, 0.0
  %v437 = vmax.f32 %v429, 0.0
  %v438 = vmax.f32 %v430, 0.0
  %v439 = vmax.f32 %v431, 0.0
  %v440 = vmax.f32 %v432, 0.0
  %v441 = vmax.f32 %v433, 0.0
  %442 = vst [vmem:[%s4] sm:$0xff] %v434
  %443 = vst [vmem:[%s4 + $0x8] sm:$0xff] %v435
  %444 = vst [vmem:[%s4 + $0x10] sm:$0xff] %v436
  %445 = vst [vmem:[%s4 + $0x18] sm:$0xff] %v437
  %446 = vst [vmem:[%s4 + $0x20] sm:$0xff] %v438
  %447 = vst [vmem:[%s4 + $0x28] sm:$0xff] %v439
  %448 = vst [vmem:[%s4 + $0x30] sm:$0xff] %v440
  %449 = vst [vmem:[%s4 + $0x38] sm:$0xff] %v441
  %v450 = vld [vmem:[%s276] sm:$0xff]
  %v451 = vld [vmem:[%s276 + $0x8] sm:$0xff]
  %v452 = vld [vmem:[%s276 + $0x10] sm:$0xff]
  %v453 = vld [vmem:[%s276 + $0x18] sm:$0xff]
  %v454 = vld [vmem:[%s276 + $0x20] sm:$0xff]
  %v455 = vld [vmem:[%s276 + $0x28] sm:$0xff]
  %v456 = vld [vmem:[%s276 + $0x30] sm:$0xff]
  %v457 = vld [vmem:[%s276 + $0x38] sm:$0xff]
  %v458 = vmul.f32 %v450, %v381
  %v459 = vmul.f32 %v451, %v381
  %v460 = vmul.f32 %v452, %v386
  %v461 = vmul.f32 %v453, %v386
  %v462 = vmul.f32 %v454, %v391
  %v463 = vmul.f32 %v455, %v391
  %v464 = vmul.f32 %v456, %v396
  %v465 = vmul.f32 %v457, %v396
  %v466 = vadd.f32 %v458, %v409
  %v467 = vadd.f32 %v459, %v409
  %v468 = vadd.f32 %v460, %v414
  %v469 = vadd.f32 %v461, %v414
  %v470 = vadd.f32 %v462, %v419
  %v471 = vadd.f32 %v463, %v419
  %v472 = vadd.f32 %v464, %v424
  %v473 = vadd.f32 %v465, %v424
  %v474 = vmax.f32 %v466, 0.0
  %v475 = vmax.f32 %v467, 0.0
  %v476 = vmax.f32 %v468, 0.0
  %v477 = vmax.f32 %v469, 0.0
  %v478 = vmax.f32 %v470, 0.0
  %v479 = vmax.f32 %v471, 0.0
  %v480 = vmax.f32 %v472, 0.0
  %v481 = vmax.f32 %v473, 0.0
  %s482 = scalar_lea.vmem %s4, 64
  %483 = vst [vmem:[%s482] sm:$0xff] %v474
  %484 = vst [vmem:[%s482 + $0x8] sm:$0xff] %v475
  %485 = vst [vmem:[%s482 + $0x10] sm:$0xff] %v476
  %486 = vst [vmem:[%s482 + $0x18] sm:$0xff] %v477
  %487 = vst [vmem:[%s482 + $0x20] sm:$0xff] %v478
  %488 = vst [vmem:[%s482 + $0x28] sm:$0xff] %v479
  %489 = vst [vmem:[%s482 + $0x30] sm:$0xff] %v480
  %490 = vst [vmem:[%s482 + $0x38] sm:$0xff] %v481
  // Predicated region
  $region18: #{mlp_forward.1} parent=0 // pred_check
    _
  $region19: #{mlp_forward.1} parent=0 // pred_check_branch
    %492 = sbr.rel (0) target = $region21
  $region20: #{mlp_forward.1} parent=0 // pred_region
    _
  $region21: #{mlp_forward.1} parent=0 // pred_fallthru
    _
  // Predicated region
  $region22: #{mlp_forward.1} parent=0 // pred_check
    _
  $region23: #{mlp_forward.1} parent=0 // pred_check_branch
    %494 = sbr.rel (0) target = $region25
  $region24: #{mlp_forward.1} parent=0 // pred_region
    _
  $region25: #{mlp_forward.1} parent=0 // pred_fallthru
    _

</llo_original>
